<compile_context>
chip_gen: v5e
topology: v5e:2x2
jax: 0.10.0
libtpu: 0.0.40
codegen_flags: <defaults>
</compile_context>

<pallas_src>
import functools
import math

import jax
import jax.numpy as jnp
from jax.experimental import pallas as pl
from jax.experimental.pallas import tpu as pltpu


CFG = dict(vocab_size=100, max_pos=16, type_vocab=2, hidden=64, heads=2,
           layers=2, ffn=256, lstm_hidden=32, num_classes=4)


def _full_spec(shape):
    n = len(shape)
    return pl.BlockSpec(shape, lambda i, _n=n: (0,) * _n)


# ---------------- pure LayerNorm (embeddings) ----------------
def _ln_kernel(x_ref, g_ref, b_ref, o_ref):
    x = x_ref[...]
    mu = jnp.mean(x, axis=-1, keepdims=True)
    var = jnp.mean((x - mu) ** 2, axis=-1, keepdims=True)
    y = (x - mu) * jax.lax.rsqrt(var + 1e-12)
    o_ref[...] = (y * g_ref[...] + b_ref[...]).astype(o_ref.dtype)


def layernorm(x, gamma, beta):
    M, D = x.shape
    args = (x, gamma.reshape(1, D), beta.reshape(1, D))
    return pl.pallas_call(
        _ln_kernel,
        out_shape=jax.ShapeDtypeStruct((M, D), jnp.float32),
        grid=(1,),
        in_specs=[_full_spec(a.shape) for a in args],
        out_specs=_full_spec((M, D)),
        compiler_params=pltpu.CompilerParams(dimension_semantics=("arbitrary",)),
    )(*args)


# ---------------- fused transformer encoder layer ----------------
def _encoder_layer_kernel(x_ref, mask_ref, wqkv_ref, bqkv_ref, wo_ref, bo_ref,
                          ln1g_ref, ln1b_ref, w1_ref, b1_ref, w2_ref, b2_ref,
                          ln2g_ref, ln2b_ref, o_ref, *, num_heads, seq_len, scale):
    M, D = x_ref.shape
    S = seq_len
    B = M // S
    nh = num_heads
    dh = D // nh

    x = x_ref[...]                                    # (M, D) f32
    xb = x.astype(jnp.bfloat16)

    # --- fused QKV projection: one (M, D) @ (D, 3D) MXU matmul ---
    qkv = jnp.dot(xb, wqkv_ref[...].astype(jnp.bfloat16),
                  preferred_element_type=jnp.float32) + bqkv_ref[...]     # (M, 3D) f32
    qkvb = qkv.astype(jnp.bfloat16)
    mask = mask_ref[...]                              # (B, S) additive mask, f32

    # --- attention, all B*nh heads inside this single kernel invocation ---
    ctx_rows = []
    for b in range(B):
        lo = b * S
        head_ctx = []
        for h in range(nh):
            q = qkvb[lo:lo + S, h * dh:(h + 1) * dh]                      # (S, dh) bf16
            k = qkvb[lo:lo + S, D + h * dh:D + (h + 1) * dh]
            v = qkvb[lo:lo + S, 2 * D + h * dh:2 * D + (h + 1) * dh]
            # q @ k^T without materializing the transpose
            s = jax.lax.dot_general(q, k, (((1,), (1,)), ((), ())),
                                    preferred_element_type=jnp.float32) * scale
            s = s + mask[b:b + 1, :]                  # f32 mask add (bf16-unsafe -1e9 stays f32)
            s = s - jnp.max(s, axis=-1, keepdims=True)
            p = jnp.exp(s)
            p = p * pl.reciprocal(jnp.sum(p, axis=-1, keepdims=True), approx=True)
            head_ctx.append(jnp.dot(p.astype(jnp.bfloat16), v,
                                    preferred_element_type=jnp.float32))  # (S, dh) f32
        ctx_rows.append(jnp.concatenate(head_ctx, axis=1))                # (S, D)
    ctx = jnp.concatenate(ctx_rows, axis=0)                               # (M, D) f32

    # --- attention output projection + residual + LayerNorm (f32 stats) ---
    attn_out = jnp.dot(ctx.astype(jnp.bfloat16), wo_ref[...].astype(jnp.bfloat16),
                       preferred_element_type=jnp.float32) + bo_ref[...]
    h1 = attn_out + x
    mu = jnp.mean(h1, axis=-1, keepdims=True)
    var = jnp.mean((h1 - mu) ** 2, axis=-1, keepdims=True)
    h1 = (h1 - mu) * jax.lax.rsqrt(var + 1e-12)
    h1 = h1 * ln1g_ref[...] + ln1b_ref[...]

    # --- FFN ---
    f = jnp.dot(h1.astype(jnp.bfloat16), w1_ref[...].astype(jnp.bfloat16),
                preferred_element_type=jnp.float32) + b1_ref[...]
    # TODO(synk): HF BERT default is exact erf-GELU; tanh approximation used here.
    f = 0.5 * f * (1.0 + jnp.tanh(0.7978845608028654 * (f + 0.044715 * f * f * f)))
    f2 = jnp.dot(f.astype(jnp.bfloat16), w2_ref[...].astype(jnp.bfloat16),
                 preferred_element_type=jnp.float32) + b2_ref[...]

    h2 = f2 + h1
    mu2 = jnp.mean(h2, axis=-1, keepdims=True)
    var2 = jnp.mean((h2 - mu2) ** 2, axis=-1, keepdims=True)
    h2 = (h2 - mu2) * jax.lax.rsqrt(var2 + 1e-12)
    o_ref[...] = (h2 * ln2g_ref[...] + ln2b_ref[...]).astype(o_ref.dtype)


def encoder_layer(x, add_mask, lyr, *, num_heads, seq_len):
    M, D = x.shape
    F = lyr["w1"].shape[1]
    kernel = functools.partial(_encoder_layer_kernel, num_heads=num_heads,
                               seq_len=seq_len,
                               scale=1.0 / math.sqrt(D // num_heads))
    args = (x, add_mask,
            lyr["wqkv"], lyr["bqkv"].reshape(1, 3 * D),
            lyr["wo"], lyr["bo"].reshape(1, D),
            lyr["ln1_g"].reshape(1, D), lyr["ln1_b"].reshape(1, D),
            lyr["w1"], lyr["b1"].reshape(1, F),
            lyr["w2"], lyr["b2"].reshape(1, D),
            lyr["ln2_g"].reshape(1, D), lyr["ln2_b"].reshape(1, D))
    return pl.pallas_call(
        kernel,
        out_shape=jax.ShapeDtypeStruct((M, D), jnp.float32),
        grid=(1,),
        in_specs=[_full_spec(a.shape) for a in args],
        out_specs=_full_spec((M, D)),
        compiler_params=pltpu.CompilerParams(dimension_semantics=("arbitrary",)),
    )(*args)


# ---------------- fused LSTM (unrolled in-kernel recurrence) + classifier ----------------
def _lstm_cls_kernel(x_ref, wih_ref, whh_ref, b_ref, wc_ref, bc_ref, o_ref,
                     *, seq_len, batch):
    S, B = seq_len, batch
    H = whh_ref.shape[-1]

    xb = x_ref[...].astype(jnp.bfloat16)              # (S*B, D), row = t*B + b (time-major)

    # Input projection hoisted out of the recurrence: one matmul per gate over all steps.
    # Gate-major weight layout (4, D, H) keeps each gate a clean tile (no lane slicing
    # of a 4H-wide result inside the serial loop).  PyTorch gate order: i, f, g, o.
    gx = [jnp.dot(xb, wih_ref[g].astype(jnp.bfloat16),
                  preferred_element_type=jnp.float32) + b_ref[g]
          for g in range(4)]                          # each (S*B, H) f32
    whh_b = [whh_ref[g].astype(jnp.bfloat16) for g in range(4)]

    h = jnp.zeros((B, H), jnp.float32)
    c = jnp.zeros((B, H), jnp.float32)
    for t in range(S):                                # fully unrolled: S is small & static
        lo = t * B
        hb = h.astype(jnp.bfloat16)
        pre = [gx[g][lo:lo + B] + jnp.dot(hb, whh_b[g],
                                          preferred_element_type=jnp.float32)
               for g in range(4)]
        i_g = jax.nn.sigmoid(pre[0])
        f_g = jax.nn.sigmoid(pre[1])
        g_g = jnp.tanh(pre[2])
        o_g = jax.nn.sigmoid(pre[3])
        c = f_g * c + i_g * g_g
        h = o_g * jnp.tanh(c)

    # fused classifier on the last hidden state
    logits = jnp.dot(h.astype(jnp.bfloat16), wc_ref[...].astype(jnp.bfloat16),
                     preferred_element_type=jnp.float32) + bc_ref[...]
    o_ref[...] = logits.astype(o_ref.dtype)


def lstm_classifier(x_time, w_ih, w_hh, bias, cls_w, cls_b, *, seq_len, batch):
    H = w_hh.shape[-1]
    C = cls_w.shape[-1]
    kernel = functools.partial(_lstm_cls_kernel, seq_len=seq_len, batch=batch)
    args = (x_time, w_ih, w_hh, bias.reshape(4, 1, H), cls_w, cls_b.reshape(1, C))
    return pl.pallas_call(
        kernel,
        out_shape=jax.ShapeDtypeStruct((batch, C), jnp.float32),
        grid=(1,),
        in_specs=[_full_spec(a.shape) for a in args],
        out_specs=_full_spec((batch, C)),
        compiler_params=pltpu.CompilerParams(dimension_semantics=("arbitrary",)),
    )(*args)


# ---------------- params / forward ----------------
def init_params(key):
    D, F = CFG["hidden"], CFG["ffn"]
    Hl, C = CFG["lstm_hidden"], CFG["num_classes"]
    ks = iter(jax.random.split(key, 64))

    def nrm(shape, scale=0.02):
        return (scale * jax.random.normal(next(ks), shape)).astype(jnp.float32)

    p = {}
    p["word_emb"] = nrm((CFG["vocab_size"], D))
    p["pos_emb"] = nrm((CFG["max_pos"], D))
    p["type_emb"] = nrm((CFG["type_vocab"], D))
    p["emb_ln_g"] = jnp.ones((D,), jnp.float32)
    p["emb_ln_b"] = jnp.zeros((D,), jnp.float32)

    p["layers"] = []
    for _ in range(CFG["layers"]):
        lyr = dict(
            wqkv=nrm((D, 3 * D)), bqkv=jnp.zeros((3 * D,), jnp.float32),
            wo=nrm((D, D)), bo=jnp.zeros((D,), jnp.float32),
            ln1_g=jnp.ones((D,), jnp.float32), ln1_b=jnp.zeros((D,), jnp.float32),
            w1=nrm((D, F)), b1=jnp.zeros((F,), jnp.float32),
            w2=nrm((F, D)), b2=jnp.zeros((D,), jnp.float32),
            ln2_g=jnp.ones((D,), jnp.float32), ln2_b=jnp.zeros((D,), jnp.float32),
        )
        p["layers"].append(lyr)

    # LSTM stored gate-major (gate, in, H); PyTorch gate order i, f, g, o.
    p["lstm_w_ih"] = nrm((4, D, Hl), 0.1)
    p["lstm_w_hh"] = nrm((4, Hl, Hl), 0.1)
    p["lstm_b"] = jnp.zeros((4, Hl), jnp.float32)     # b_ih + b_hh combined

    p["cls_w"] = nrm((Hl, C), 0.1)
    p["cls_b"] = jnp.zeros((C,), jnp.float32)
    return p


def forward(params, input_ids, attention_mask):
    B, S = input_ids.shape
    D, nh = CFG["hidden"], CFG["heads"]

    # --- BERT embeddings (lookup = glue; LayerNorm = kernel, no zero residual) ---
    emb = (jnp.take(params["word_emb"], input_ids, axis=0)
           + params["pos_emb"][:S][None, :, :]
           + params["type_emb"][0][None, None, :])            # token_type_ids = 0
    x = emb.reshape(B * S, D).astype(jnp.float32)
    x = layernorm(x, params["emb_ln_g"], params["emb_ln_b"])

    # additive attention mask (B, S), kept in f32 inside the kernel
    add_mask = (1.0 - attention_mask.astype(jnp.float32)) * -1e9

    # --- transformer encoder: one fused Pallas kernel per layer ---
    for lyr in params["layers"]:
        x = encoder_layer(x, add_mask, lyr, num_heads=nh, seq_len=S)

    # --- LSTM over last_hidden_state (batch_first) + classifier, one fused kernel ---
    hidden = x.reshape(B, S, D)
    x_time = jnp.transpose(hidden, (1, 0, 2)).reshape(S * B, D)   # time-major rows
    logits = lstm_classifier(x_time, params["lstm_w_ih"], params["lstm_w_hh"],
                             params["lstm_b"], params["cls_w"], params["cls_b"],
                             seq_len=S, batch=B)
    return logits


if __name__ == "__main__":
    key = jax.random.PRNGKey(0)
    k_par, k_ids = jax.random.split(key)

    params = init_params(k_par)

    B, S = 2, 8
    input_ids = jax.random.randint(k_ids, (B, S), 0, CFG["vocab_size"], dtype=jnp.int32)
    attention_mask = jnp.array([[1, 1, 1, 1, 1, 1, 1, 1],
                                [1, 1, 1, 1, 1, 1, 0, 0]], dtype=jnp.int32)

    logits = forward(params, input_ids, attention_mask)
    logits = jax.block_until_ready(logits)
    assert logits.shape == (B, CFG["num_classes"])
    assert bool(jnp.all(jnp.isfinite(logits)))
    print("KERNEL_OK")
</pallas_src>

<mosaic_0001>
module attributes {stable_mosaic.version = 11 : i64} {
  func.func @_ln_kernel(%arg0: i32, %arg1: memref<16x64xf32, #tpu.memory_space<vmem>>, %arg2: memref<1x64xf32, #tpu.memory_space<vmem>>, %arg3: memref<1x64xf32, #tpu.memory_space<vmem>>, %arg4: memref<16x64xf32, #tpu.memory_space<vmem>>) attributes {dimension_semantics = [#tpu.dimension_semantics<arbitrary>], iteration_bounds = array<i64: 1>, scalar_prefetch = 0 : i64, scratch_operands = 0 : i64, tpu.core_type = #tpu.core_type<tc>, window_params = [{pipeline_mode = #tpu.pipeline_mode<synchronous>, transform_indices = @transform_0, window_bounds = array<i64: 16, 64>}, {pipeline_mode = #tpu.pipeline_mode<synchronous>, transform_indices = @transform_1, window_bounds = array<i64: 1, 64>}, {pipeline_mode = #tpu.pipeline_mode<synchronous>, transform_indices = @transform_2, window_bounds = array<i64: 1, 64>}, {pipeline_mode = #tpu.pipeline_mode<synchronous>, transform_indices = @transform_3, window_bounds = array<i64: 16, 64>}]} {
    %c0 = arith.constant 0 : index
    %c0_0 = arith.constant 0 : index
    %0 = vector.load %arg1[%c0, %c0_0] : memref<16x64xf32, #tpu.memory_space<vmem>>, vector<16x64xf32>
    %cst = arith.constant dense<0.000000e+00> : vector<16xf32>
    %1 = vector.multi_reduction <add>, %0, %cst [1] : vector<16x64xf32> to vector<16xf32>
    %2 = vector.shape_cast %1 : vector<16xf32> to vector<16x1xf32>
    %cst_1 = arith.constant 6.400000e+01 : f32
    %3 = vector.broadcast %cst_1 : f32 to vector<16x1xf32>
    %4 = arith.divf %2, %3 : vector<16x1xf32>
    %5 = vector.broadcast %4 : vector<16x1xf32> to vector<16x64xf32>
    %6 = arith.subf %0, %5 : vector<16x64xf32>
    %7 = arith.mulf %6, %6 : vector<16x64xf32>
    %cst_2 = arith.constant dense<0.000000e+00> : vector<16xf32>
    %8 = vector.multi_reduction <add>, %7, %cst_2 [1] : vector<16x64xf32> to vector<16xf32>
    %9 = vector.shape_cast %8 : vector<16xf32> to vector<16x1xf32>
    %cst_3 = arith.constant 6.400000e+01 : f32
    %10 = vector.broadcast %cst_3 : f32 to vector<16x1xf32>
    %11 = arith.divf %9, %10 : vector<16x1xf32>
    %12 = vector.broadcast %4 : vector<16x1xf32> to vector<16x64xf32>
    %13 = arith.subf %0, %12 : vector<16x64xf32>
    %cst_4 = arith.constant 9.99999996E-13 : f32
    %14 = vector.broadcast %cst_4 : f32 to vector<16x1xf32>
    %15 = arith.addf %11, %14 : vector<16x1xf32>
    %16 = math.rsqrt %15 : vector<16x1xf32>
    %17 = vector.broadcast %16 : vector<16x1xf32> to vector<16x64xf32>
    %18 = arith.mulf %13, %17 : vector<16x64xf32>
    %c0_5 = arith.constant 0 : index
    %c0_6 = arith.constant 0 : index
    %19 = vector.load %arg2[%c0_5, %c0_6] : memref<1x64xf32, #tpu.memory_space<vmem>>, vector<1x64xf32>
    %20 = vector.broadcast %19 : vector<1x64xf32> to vector<16x64xf32>
    %21 = arith.mulf %18, %20 : vector<16x64xf32>
    %c0_7 = arith.constant 0 : index
    %c0_8 = arith.constant 0 : index
    %22 = vector.load %arg3[%c0_7, %c0_8] : memref<1x64xf32, #tpu.memory_space<vmem>>, vector<1x64xf32>
    %23 = vector.broadcast %22 : vector<1x64xf32> to vector<16x64xf32>
    %24 = arith.addf %21, %23 : vector<16x64xf32>
    %c0_9 = arith.constant 0 : index
    %c0_10 = arith.constant 0 : index
    %25 = vector.load %arg4[%c0_9, %c0_10] : memref<16x64xf32, #tpu.memory_space<vmem>>, vector<16x64xf32>
    tpu.vector_store %arg4[%c0_9, %c0_10], %24 {strides = array<i32>} : memref<16x64xf32, #tpu.memory_space<vmem>>, vector<16x64xf32>,
    return
  }
  func.func @transform_0(%arg0: i32) -> (i32, i32) {
    %c0_i32 = arith.constant 0 : i32
    %c0_i32_0 = arith.constant 0 : i32
    %c0_i32_1 = arith.constant 0 : i32
    return %c0_i32, %c0_i32_0 : i32, i32
  }
  func.func @transform_1(%arg0: i32) -> (i32, i32) {
    %c0_i32 = arith.constant 0 : i32
    %c0_i32_0 = arith.constant 0 : i32
    %c0_i32_1 = arith.constant 0 : i32
    return %c0_i32, %c0_i32_0 : i32, i32
  }
  func.func @transform_2(%arg0: i32) -> (i32, i32) {
    %c0_i32 = arith.constant 0 : i32
    %c0_i32_0 = arith.constant 0 : i32
    %c0_i32_1 = arith.constant 0 : i32
    return %c0_i32, %c0_i32_0 : i32, i32
  }
  func.func @transform_3(%arg0: i32) -> (i32, i32) {
    %c0_i32 = arith.constant 0 : i32
    %c0_i32_0 = arith.constant 0 : i32
    %c0_i32_1 = arith.constant 0 : i32
    return %c0_i32, %c0_i32_0 : i32, i32
  }
}

</mosaic_0001>

<llo_original>
// kernel: tpu_custom_call.1
$region0: #{tpu_custom_call.1}
  #allocation0 [shape = 'u32[]', space=smem, size = 0x4, offset = 0x4, fixed_abs, tag = 'smem constant byte address 0x4 - core index']
  #allocation1 [shape = 'u32[72,128]{1,0:T(1,128)}', space=vmem, size = 0x9000, scoped, tag = 'internal scratch']
  %s0 = inlined_call_operand.hbm [shape: f32[16,64], index: 0, kind: input, shape index: {}]
  %s1 = inlined_call_operand.hbm [shape: f32[1,64], index: 1, kind: input, shape index: {}]
  %s2 = inlined_call_operand.vmem [shape: f32[1,64], index: 2, kind: input, shape index: {}]
  %s3 = inlined_call_operand.hbm [shape: f32[16,64], index: 3, kind: output, shape index: {}]
  %s4 = sld [smem:[#allocation0]]
  $region30: #{tpu_custom_call.1} parent=0
    _
  %s6 = ssub.s32 1, %s4
  %s7 = scalar_select 0, %s6, %s4
  $region1: #{tpu_custom_call.1} parent=0
    #allocation2 [shape = 'u8[8192]{0}', space=vmem, size = 0x2000, scoped, tag = 'input window, operand 0, single buffered']
    #allocation3 [shape = 's32[1]{0}', space=sflag, size = 0x4, scoped, tag = 'scoped memory for tpu_custom_call.1']
    #allocation4 [shape = 's32[1]{0}', space=sflag, size = 0x4, scoped, tag = 'scoped memory for tpu_custom_call.1']
    #allocation5 [shape = 'u8[512]{0}', space=vmem, size = 0x400, scoped, tag = 'input window, operand 1, single buffered']
    #allocation6 [shape = 's32[1]{0}', space=sflag, size = 0x4, scoped, tag = 'scoped memory for tpu_custom_call.1']
    #allocation7 [shape = 'u8[8192]{0}', space=vmem, size = 0x2000, scoped, tag = 'output window, operand 0, single buffered']
    %8 = vsyncpa [#allocation3], 0
    %9 = vsyncpa [#allocation6], 0
    %10 = vsyncpa [#allocation4], 0
    // Predicated region
    $region2: #{tpu_custom_call.1} parent=1 // pred_check
      _
    $region3: #{tpu_custom_call.1} parent=1 // pred_check_branch
      %12 = sbr.rel (0) target = $region5
    $region4: #{tpu_custom_call.1} parent=1 // pred_region
      %14 = vsyncadd [#allocation3], 0
      %s15 = sshll.u32 %s0, 4
      %s16 = int_to_ptr.hbm [resolvable:$true] %s15
      %s17 = sshll.u32 [#allocation2], 4
      %s18 = int_to_ptr.vmem [resolvable:$true] %s17
      %23 = dma.hbm_to_vmem [thread:$0]  %s16, 256, %s18, [#allocation3], 128, 128, 8
    $region5: #{tpu_custom_call.1} parent=1 // pred_fallthru
      _
    // Predicated region
    $region6: #{tpu_custom_call.1} parent=1 // pred_check
      _
    $region7: #{tpu_custom_call.1} parent=1 // pred_check_branch
      %25 = sbr.rel (0) target = $region9
    $region8: #{tpu_custom_call.1} parent=1 // pred_region
      %27 = vsyncadd [#allocation6], 0
      %s29 = sshll.u32 %s1, 4
      %s30 = int_to_ptr.hbm [resolvable:$true] %s29
      %s31 = sshll.u32 [#allocation5], 4
      %s32 = int_to_ptr.vmem [resolvable:$true] %s31
      %34 = dma.hbm_to_vmem [thread:$0]  %s30, 16, %s32, [#allocation6]
    $region9: #{tpu_custom_call.1} parent=1 // pred_fallthru
      _
    // Predicated region
    $region10: #{tpu_custom_call.1} parent=1 // pred_check
      _
    $region11: #{tpu_custom_call.1} parent=1 // pred_check_branch
      %36 = sbr.rel (0) target = $region13
    $region12: #{tpu_custom_call.1} parent=1 // pred_region
      _
    $region13: #{tpu_custom_call.1} parent=1 // pred_fallthru
      _
    // Predicated region
    $region14: #{tpu_custom_call.1} parent=1 // pred_check
      _
    $region15: #{tpu_custom_call.1} parent=1 // pred_check_branch
      %38 = sbr.rel (0) target = $region17
    $region16: #{tpu_custom_call.1} parent=1 // pred_region
      %40 = dma.done [#allocation3], 256
    $region17: #{tpu_custom_call.1} parent=1 // pred_fallthru
      _
    // Predicated region
    $region18: #{tpu_custom_call.1} parent=1 // pred_check
      _
    $region19: #{tpu_custom_call.1} parent=1 // pred_check_branch
      %42 = sbr.rel (0) target = $region21
    $region20: #{tpu_custom_call.1} parent=1 // pred_region
      %44 = dma.done [#allocation6], 16
    $region21: #{tpu_custom_call.1} parent=1 // pred_fallthru
      _
    %v45 = vld [vmem:[#allocation2] sm:$0xff]
    %v46 = vld [vmem:[#allocation2 + $0x8] sm:$0xff]
    %vm47 = vcmask 523264
    %v48 = vsel %vm47, %v45, 0.0
    %49 = vadd.xlane.f32.xlu0 %v48
    %v50 = vpop.xlane.xlu0 %49
    %v51 = vsel %vm47, %v46, 0.0
    %52 = vadd.xlane.f32.xlu0 %v51
    %v53 = vpop.xlane.xlu0 %52
    %v54 = vrcp.pop 64.0
    %v55 = vmul.f32 64.0, %v54
    %v56 = vsub.f32 1.0, %v55
    %v57 = vmul.f32 %v54, %v56
    %v58 = vadd.f32 %v54, %v57
    %vm59 = vweird.f32 %v54
    %v60 = vsel %vm59, %v54, %v58
    %v61 = vmul.f32 %v50, %v60
    %v62 = vmul.f32 %v53, %v60
    %v63 = vsub.f32 %v45, %v61
    %v64 = vsub.f32 %v46, %v62
    %v65 = vmul.f32 %v63, %v63
    %v66 = vmul.f32 %v64, %v64
    %v67 = vsel %vm47, %v65, 0.0
    %68 = vadd.xlane.f32.xlu0 %v67
    %v69 = vpop.xlane.xlu0 %68
    %v70 = vsel %vm47, %v66, 0.0
    %71 = vadd.xlane.f32.xlu0 %v70
    %v72 = vpop.xlane.xlu0 %71
    %v73 = vmul.f32 %v69, %v60
    %v74 = vmul.f32 %v72, %v60
    %v75 = vadd.f32 %v73, 1e-12
    %v76 = vadd.f32 %v74, 1e-12
    %v77 = vrsqrt.pop %v75
    %v78 = vmul.f32 %v77, %v75
    %v79 = vmul.f32 %v78, %v77
    %v80 = vmul.f32 0.5, %v79
    %v81 = vsub.f32 1.5, %v80
    %v82 = vmul.f32 %v77, %v81
    %vm83 = vweird.f32 %v75
    %vm84 = vweird.f32 %v77
    %vm85 = vmor %vm83, %vm84
    %v86 = vsel %vm85, %v77, %v82
    %v87 = vrsqrt.pop %v76
    %v88 = vmul.f32 %v87, %v76
    %v89 = vmul.f32 %v88, %v87
    %v90 = vmul.f32 0.5, %v89
    %v91 = vsub.f32 1.5, %v90
    %v92 = vmul.f32 %v87, %v91
    %vm93 = vweird.f32 %v76
    %vm94 = vweird.f32 %v87
    %vm95 = vmor %vm93, %vm94
    %v96 = vsel %vm95, %v87, %v92
    %v97 = vmul.f32 %v63, %v86
    %v98 = vmul.f32 %v64, %v96
    %v99 = vld [vmem:[#allocation5] sm:$0x1]
    %v101 = vperm.slane %v99, 0
    %v103 = vmul.f32 %v97, %v101
    %v104 = vmul.f32 %v98, %v101
    %v105 = vld [vmem:[%s2] sm:$0x1]
    %v107 = vperm.slane %v105, 0
    %v109 = vadd.f32 %v103, %v107
    %v110 = vadd.f32 %v104, %v107
    %111 = vst.msk [vmem:[#allocation7] sm:$0xff] %vm47, %v109
    %112 = vst.msk [vmem:[#allocation7 + $0x8] sm:$0xff] %vm47, %v110
    // Predicated region
    $region22: #{tpu_custom_call.1} parent=1 // pred_check
      _
    $region23: #{tpu_custom_call.1} parent=1 // pred_check_branch
      %114 = sbr.rel (0) target = $region25
    $region24: #{tpu_custom_call.1} parent=1 // pred_region
      %116 = vsyncadd [#allocation4], 0
      %s117 = sshll.u32 [#allocation7], 4
      %s118 = int_to_ptr.vmem [resolvable:$true] %s117
      %s119 = sshll.u32 %s3, 4
      %s120 = int_to_ptr.hbm [resolvable:$true] %s119
      %125 = dma.vmem_to_hbm [thread:$0]  %s118, 256, %s120, [#allocation4], 128, 128, 8
    $region25: #{tpu_custom_call.1} parent=1 // pred_fallthru
      _
    // Predicated region
    $region26: #{tpu_custom_call.1} parent=1 // pred_check
      _
    $region27: #{tpu_custom_call.1} parent=1 // pred_check_branch
      %127 = sbr.rel (0) target = $region29
    $region28: #{tpu_custom_call.1} parent=1 // pred_region
      %129 = dma.done [#allocation4], 256
    $region29: #{tpu_custom_call.1} parent=1 // pred_fallthru
      _
    %130 = vsyncpa [#allocation3], 1
    %131 = vsyncpa [#allocation6], 1
    %132 = vsyncpa [#allocation4], 1

</llo_original>
